<compile_context>
chip_gen: v6e
topology: v6e:2x2x1
jax: 0.10.0
libtpu: 0.0.40
codegen_flags: <defaults>
</compile_context>

<pallas_src>
import jax
import jax.numpy as jnp
import numpy as np
from jax import lax
from jax.experimental import pallas as pl
from jax.experimental.pallas import tpu as pltpu


# -----------------------------------------------------------------------------
# small static helpers
# -----------------------------------------------------------------------------
def _round_up(x, m):
    return ((x + m - 1) // m) * m


def _pick_hw_tile(hw, max_tile=1024):
    """Largest multiple-of-128 divisor of hw, capped at max_tile (keeps VMEM
    blocks bounded across v5e/v6e/v7x).  Falls back to the full extent for
    tiny / odd spatial sizes."""
    if hw % 128 != 0:
        return hw
    t = min(max_tile, hw)
    t -= t % 128
    while t >= 128:
        if hw % t == 0:
            return t
        t -= 128
    return hw


def _bilinear_weights_T(H, W, G):
    """Constant (G*G, H*W) bilinear-interpolation matrix, transposed so HW sits
    on the lane axis.  Pure function of static shapes -> computed in numpy at
    trace time; no per-pixel index math enters the kernel."""
    GG = G * G
    # torch.linspace(0, 1, N)[i] == i / (N - 1); guard degenerate N == 1.
    gy = (np.arange(H, dtype=np.float32) / max(H - 1, 1)) * (G - 1)
    gx = (np.arange(W, dtype=np.float32) / max(W - 1, 1)) * (G - 1)
    i0 = np.floor(gy).astype(np.int32)
    j0 = np.floor(gx).astype(np.int32)
    i1 = np.minimum(i0 + 1, G - 1)
    j1 = np.minimum(j0 + 1, G - 1)
    yf = (gy - i0)[:, None]                       # (H, 1)
    xf = (gx - j0)[None, :]                       # (1, W)
    ids = np.arange(GG, dtype=np.int32)[None, None, :]

    def onehot(ii, jj):                           # (H, W, GG)
        return ((ii[:, None] * G + jj[None, :])[:, :, None] == ids).astype(np.float32)

    wb = (onehot(i0, j0) * ((1.0 - yf) * (1.0 - xf))[:, :, None]
          + onehot(i0, j1) * ((1.0 - yf) * xf)[:, :, None]
          + onehot(i1, j0) * (yf * (1.0 - xf))[:, :, None]
          + onehot(i1, j1) * (yf * xf)[:, :, None])           # (H, W, GG)
    return wb.reshape(H * W, GG).T                # (GG, HW)


# -----------------------------------------------------------------------------
# fused kernel: conv3x3+BN (folded) matmul  +  spline matmul.  Everything is
# lane-dense (HW tile on the lane axis); the kernel body is two MXU matmuls
# plus two broadcast adds.
# -----------------------------------------------------------------------------
def _kan_block_kernel(p_ref, w_ref, shift_ref, cp_ref, wbil_ref, lb_ref,
                      conv_ref, out_ref):
    # conv + folded BN: (Cout, Kc) @ (Kc, tile_hw) -> (Cout, tile_hw)
    conv_ref[0] = (jnp.dot(w_ref[...], p_ref[0],
                           preferred_element_type=jnp.float32)
                   + shift_ref[...])
    # spline: (Cout, GGp) @ (GGp, tile_hw) -> (Cout, tile_hw)
    out_ref[0] = (jnp.dot(cp_ref[...], wbil_ref[...],
                          preferred_element_type=jnp.float32)
                  + lb_ref[...])


# -----------------------------------------------------------------------------
# KANBlock forward
# -----------------------------------------------------------------------------
def kan_block_forward(x_nchw, params):
    B, Cin, H, W = x_nchw.shape
    conv_w = params["conv_w"]                     # torch OIHW: (Cout, Cin, 3, 3)
    Cout = conv_w.shape[0]
    GG = params["control_points"].shape[0]
    G = int(round(GG ** 0.5))
    HW = H * W
    f32 = jnp.float32

    # --- wrapper-side folding / layout glue ---------------------------------
    # Fold eval-mode BN into conv:  s*(Wx + b) + t == (s*W) x + (s*b + t)
    s = params["bn_scale"]
    t = params["bn_shift"]
    w2d = conv_w.transpose(0, 2, 3, 1).reshape(Cout, 9 * Cin)   # (Cout, 9*Cin)
    w_eff = w2d * s[:, None]
    shift_eff = (s * params["conv_b"] + t).reshape(Cout, 1)

    # im2col, transposed so the matmul output is lane-dense (Cout, HW) == NCHW.
    xp = jnp.pad(x_nchw, ((0, 0), (0, 0), (1, 1), (1, 1)))
    taps = [xp[:, :, kh:kh + H, kw:kw + W] for kh in range(3) for kw in range(3)]
    patches = jnp.stack(taps, axis=1).reshape(B, 9 * Cin, HW)   # (B, 9*Cin, HW)

    # zero-pad the conv contraction dim to a multiple of 8 sublanes (f32).
    Kc = _round_up(9 * Cin, 8)
    patches = jnp.pad(patches, ((0, 0), (0, Kc - 9 * Cin), (0, 0)))
    w_eff = jnp.pad(w_eff, ((0, 0), (0, Kc - 9 * Cin)))

    # Spline: fold the output Linear into the control points and precompute the
    # constant bilinear matrix; kernel does a single matmul + bias.
    cp_eff_T = jnp.dot(params["lin_w"], params["control_points"].T,
                       precision=lax.Precision.HIGHEST)         # (Cout, GG)
    wbil_T = jnp.asarray(_bilinear_weights_T(H, W, G), f32)     # (GG, HW) const
    GGp = _round_up(GG, 8)
    cp_eff_T = jnp.pad(cp_eff_T, ((0, 0), (0, GGp - GG)))
    wbil_T = jnp.pad(wbil_T, ((0, GGp - GG), (0, 0)))
    lin_b = params["lin_b"].reshape(Cout, 1)

    tile_hw = _pick_hw_tile(HW)
    grid = (B, HW // tile_hw)

    conv_bn_out, spline_out = pl.pallas_call(
        _kan_block_kernel,
        out_shape=(jax.ShapeDtypeStruct((B, Cout, HW), f32),
                   jax.ShapeDtypeStruct((B, Cout, HW), f32)),
        grid=grid,
        in_specs=[
            pl.BlockSpec((1, Kc, tile_hw), lambda b, h: (b, 0, h)),   # patches
            pl.BlockSpec((Cout, Kc), lambda b, h: (0, 0)),            # w_eff
            pl.BlockSpec((Cout, 1), lambda b, h: (0, 0)),             # shift_eff
            pl.BlockSpec((Cout, GGp), lambda b, h: (0, 0)),           # cp_eff_T
            pl.BlockSpec((GGp, tile_hw), lambda b, h: (0, h)),        # wbil_T
            pl.BlockSpec((Cout, 1), lambda b, h: (0, 0)),             # lin_b
        ],
        out_specs=(pl.BlockSpec((1, Cout, tile_hw), lambda b, h: (b, 0, h)),
                   pl.BlockSpec((1, Cout, tile_hw), lambda b, h: (b, 0, h))),
        compiler_params=pltpu.CompilerParams(
            dimension_semantics=("parallel", "parallel")),
    )(patches, w_eff, shift_eff, cp_eff_T, wbil_T, lin_b)

    # Both results are already NCHW-ordered: pure reshape, no transpose.
    out = spline_out.reshape(B, Cout, H, W)       # == torch KANBlock output
    conv_bn_out = conv_bn_out.reshape(B, Cout, H, W)   # intermediate (mirrors torch)
    return out, conv_bn_out


# -----------------------------------------------------------------------------
# pure-JAX reference (torch-style math) for the self-check in __main__
# -----------------------------------------------------------------------------
def _reference_forward(x, params):
    B, Cin, H, W = x.shape
    Cout = params["conv_w"].shape[0]
    G = int(round(params["control_points"].shape[0] ** 0.5))
    y = lax.conv_general_dilated(x, params["conv_w"], (1, 1), ((1, 1), (1, 1)),
                                 dimension_numbers=("NCHW", "OIHW", "NCHW"),
                                 precision=lax.Precision.HIGHEST)
    y = y + params["conv_b"][None, :, None, None]
    y = y * params["bn_scale"][None, :, None, None] + params["bn_shift"][None, :, None, None]

    gy = (jnp.arange(H, dtype=jnp.float32) / max(H - 1, 1)) * (G - 1)
    gx = (jnp.arange(W, dtype=jnp.float32) / max(W - 1, 1)) * (G - 1)
    grid_y, grid_x = jnp.meshgrid(gy, gx, indexing="ij")
    i0 = jnp.floor(grid_y).astype(jnp.int32)
    j0 = jnp.floor(grid_x).astype(jnp.int32)
    i1 = jnp.minimum(i0 + 1, G - 1)
    j1 = jnp.minimum(j0 + 1, G - 1)
    yf = (grid_y - i0)[..., None]
    xf = (grid_x - j0)[..., None]
    cp = params["control_points"]
    cp00 = cp[(i0 * G + j0).reshape(-1)].reshape(H, W, -1)
    cp01 = cp[(i0 * G + j1).reshape(-1)].reshape(H, W, -1)
    cp10 = cp[(i1 * G + j0).reshape(-1)].reshape(H, W, -1)
    cp11 = cp[(i1 * G + j1).reshape(-1)].reshape(H, W, -1)
    top = cp00 * (1 - xf) + cp01 * xf
    bot = cp10 * (1 - xf) + cp11 * xf
    interp = (top * (1 - yf) + bot * yf).reshape(H * W, -1)
    o = jnp.dot(interp, params["lin_w"].T,
                precision=lax.Precision.HIGHEST) + params["lin_b"]
    o = o.reshape(H, W, Cout).transpose(2, 0, 1)
    return jnp.broadcast_to(o[None], (B, Cout, H, W)), y


if __name__ == "__main__":
    B, Cin, H, W = 2, 4, 16, 16
    Cout, G = 8, 5
    eps = 1e-5
    key = jax.random.PRNGKey(0)
    ks = jax.random.split(key, 6)
    params = {
        # torch-style parameters
        "conv_w": jax.random.normal(ks[0], (Cout, Cin, 3, 3), jnp.float32) * 0.1,  # OIHW
        "conv_b": jax.random.normal(ks[1], (Cout,), jnp.float32) * 0.1,
        # BatchNorm2d eval-mode fold inputs: gamma=1, beta=0, mean=0, var=1
        "bn_scale": jnp.ones((Cout,), jnp.float32) / jnp.sqrt(1.0 + eps),
        "bn_shift": jnp.zeros((Cout,), jnp.float32),
        "control_points": jax.random.normal(ks[2], (G * G, Cout), jnp.float32) * 0.1,
        "lin_w": jax.random.normal(ks[3], (Cout, Cout), jnp.float32) * 0.1,  # (out, in)
        "lin_b": jax.random.normal(ks[4], (Cout,), jnp.float32) * 0.1,
    }
    x = jax.random.normal(ks[5], (B, Cin, H, W), jnp.float32)

    out, conv_bn_out = jax.jit(kan_block_forward)(x, params)
    jax.block_until_ready((out, conv_bn_out))

    assert out.shape == (B, Cout, H, W) and out.dtype == jnp.float32
    assert conv_bn_out.shape == (B, Cout, H, W)

    ref_out, ref_conv = _reference_forward(x, params)
    assert bool(jnp.allclose(out, ref_out, atol=1e-3, rtol=1e-3))
    assert bool(jnp.allclose(conv_bn_out, ref_conv, atol=1e-3, rtol=1e-3))
    # spline output is identical across the batch (matches torch .repeat(B,...))
    assert bool(jnp.allclose(out[0], out[1]))
    print("KERNEL_OK")
</pallas_src>

<mosaic_0001>
module attributes {stable_mosaic.version = 11 : i64} {
  func.func @_kan_block_kernel(%arg0: i32, %arg1: i32, %arg2: memref<1x40x256xf32, #tpu.memory_space<vmem>>, %arg3: memref<8x40xf32, #tpu.memory_space<vmem>>, %arg4: memref<8x1xf32, #tpu.memory_space<vmem>>, %arg5: memref<8x32xf32, #tpu.memory_space<vmem>>, %arg6: memref<32x256xf32, #tpu.memory_space<vmem>>, %arg7: memref<8x1xf32, #tpu.memory_space<vmem>>, %arg8: memref<1x8x256xf32, #tpu.memory_space<vmem>>, %arg9: memref<1x8x256xf32, #tpu.memory_space<vmem>>) attributes {dimension_semantics = [#tpu.dimension_semantics<parallel>, #tpu.dimension_semantics<parallel>], iteration_bounds = array<i64: 2, 1>, scalar_prefetch = 0 : i64, scratch_operands = 0 : i64, tpu.core_type = #tpu.core_type<tc>, window_params = [{transform_indices = @transform_0, window_bounds = array<i64: 1, 40, 256>}, {pipeline_mode = #tpu.pipeline_mode<synchronous>, transform_indices = @transform_1, window_bounds = array<i64: 8, 40>}, {pipeline_mode = #tpu.pipeline_mode<synchronous>, transform_indices = @transform_2, window_bounds = array<i64: 8, 1>}, {pipeline_mode = #tpu.pipeline_mode<synchronous>, transform_indices = @transform_3, window_bounds = array<i64: 8, 32>}, {transform_indices = @transform_4, window_bounds = array<i64: 32, 256>}, {pipeline_mode = #tpu.pipeline_mode<synchronous>, transform_indices = @transform_5, window_bounds = array<i64: 8, 1>}, {transform_indices = @transform_6, window_bounds = array<i64: 1, 8, 256>}, {transform_indices = @transform_7, window_bounds = array<i64: 1, 8, 256>}]} {
    %c0 = arith.constant 0 : index
    %c0_0 = arith.constant 0 : index
    %0 = vector.load %arg3[%c0, %c0_0] : memref<8x40xf32, #tpu.memory_space<vmem>>, vector<8x40xf32>
    %c0_1 = arith.constant 0 : index
    %c0_2 = arith.constant 0 : index
    %c0_3 = arith.constant 0 : index
    %1 = vector.load %arg2[%c0_1, %c0_2, %c0_3] : memref<1x40x256xf32, #tpu.memory_space<vmem>>, vector<1x40x256xf32>
    %2 = vector.shape_cast %1 : vector<1x40x256xf32> to vector<40x256xf32>
    %cst = arith.constant dense<0.000000e+00> : vector<8x256xf32>
    %3 = tpu.matmul %0, %2, %cst {dimension_numbers = #tpu.dot_dimension_numbers<[1], [0], [0], [1], [0, 0, 1, 1], [], []>} : vector<8x40xf32>, vector<40x256xf32>, vector<8x256xf32> -> vector<8x256xf32>
    %c0_4 = arith.constant 0 : index
    %c0_5 = arith.constant 0 : index
    %4 = vector.load %arg4[%c0_4, %c0_5] : memref<8x1xf32, #tpu.memory_space<vmem>>, vector<8x1xf32>
    %5 = vector.broadcast %4 : vector<8x1xf32> to vector<8x256xf32>
    %6 = arith.addf %3, %5 : vector<8x256xf32>
    %c0_6 = arith.constant 0 : index
    %c0_7 = arith.constant 0 : index
    %c0_8 = arith.constant 0 : index
    %7 = vector.load %arg8[%c0_6, %c0_7, %c0_8] : memref<1x8x256xf32, #tpu.memory_space<vmem>>, vector<1x8x256xf32>
    %8 = vector.shape_cast %7 : vector<1x8x256xf32> to vector<8x256xf32>
    %9 = vector.shape_cast %6 : vector<8x256xf32> to vector<1x8x256xf32>
    tpu.vector_store %arg8[%c0_6, %c0_7, %c0_8], %9 {strides = array<i32>} : memref<1x8x256xf32, #tpu.memory_space<vmem>>, vector<1x8x256xf32>,
    %c0_9 = arith.constant 0 : index
    %c0_10 = arith.constant 0 : index
    %10 = vector.load %arg5[%c0_9, %c0_10] : memref<8x32xf32, #tpu.memory_space<vmem>>, vector<8x32xf32>
    %c0_11 = arith.constant 0 : index
    %c0_12 = arith.constant 0 : index
    %11 = vector.load %arg6[%c0_11, %c0_12] : memref<32x256xf32, #tpu.memory_space<vmem>>, vector<32x256xf32>
    %cst_13 = arith.constant dense<0.000000e+00> : vector<8x256xf32>
    %12 = tpu.matmul %10, %11, %cst_13 {dimension_numbers = #tpu.dot_dimension_numbers<[1], [0], [0], [1], [0, 0, 1, 1], [], []>} : vector<8x32xf32>, vector<32x256xf32>, vector<8x256xf32> -> vector<8x256xf32>
    %c0_14 = arith.constant 0 : index
    %c0_15 = arith.constant 0 : index
    %13 = vector.load %arg7[%c0_14, %c0_15] : memref<8x1xf32, #tpu.memory_space<vmem>>, vector<8x1xf32>
    %14 = vector.broadcast %13 : vector<8x1xf32> to vector<8x256xf32>
    %15 = arith.addf %12, %14 : vector<8x256xf32>
    %c0_16 = arith.constant 0 : index
    %c0_17 = arith.constant 0 : index
    %c0_18 = arith.constant 0 : index
    %16 = vector.load %arg9[%c0_16, %c0_17, %c0_18] : memref<1x8x256xf32, #tpu.memory_space<vmem>>, vector<1x8x256xf32>
    %17 = vector.shape_cast %16 : vector<1x8x256xf32> to vector<8x256xf32>
    %18 = vector.shape_cast %15 : vector<8x256xf32> to vector<1x8x256xf32>
    tpu.vector_store %arg9[%c0_16, %c0_17, %c0_18], %18 {strides = array<i32>} : memref<1x8x256xf32, #tpu.memory_space<vmem>>, vector<1x8x256xf32>,
    return
  }
  func.func @transform_0(%arg0: i32, %arg1: i32) -> (i32, i32, i32) {
    %c0_i32 = arith.constant 0 : i32
    %c0_i32_0 = arith.constant 0 : i32
    return %arg0, %c0_i32, %arg1 : i32, i32, i32
  }
  func.func @transform_1(%arg0: i32, %arg1: i32) -> (i32, i32) {
    %c0_i32 = arith.constant 0 : i32
    %c0_i32_0 = arith.constant 0 : i32
    %c0_i32_1 = arith.constant 0 : i32
    return %c0_i32, %c0_i32_0 : i32, i32
  }
  func.func @transform_2(%arg0: i32, %arg1: i32) -> (i32, i32) {
    %c0_i32 = arith.constant 0 : i32
    %c0_i32_0 = arith.constant 0 : i32
    %c0_i32_1 = arith.constant 0 : i32
    return %c0_i32, %c0_i32_0 : i32, i32
  }
  func.func @transform_3(%arg0: i32, %arg1: i32) -> (i32, i32) {
    %c0_i32 = arith.constant 0 : i32
    %c0_i32_0 = arith.constant 0 : i32
    %c0_i32_1 = arith.constant 0 : i32
    return %c0_i32, %c0_i32_0 : i32, i32
  }
  func.func @transform_4(%arg0: i32, %arg1: i32) -> (i32, i32) {
    %c0_i32 = arith.constant 0 : i32
    %c0_i32_0 = arith.constant 0 : i32
    return %c0_i32, %arg1 : i32, i32
  }
  func.func @transform_5(%arg0: i32, %arg1: i32) -> (i32, i32) {
    %c0_i32 = arith.constant 0 : i32
    %c0_i32_0 = arith.constant 0 : i32
    %c0_i32_1 = arith.constant 0 : i32
    return %c0_i32, %c0_i32_0 : i32, i32
  }
  func.func @transform_6(%arg0: i32, %arg1: i32) -> (i32, i32, i32) {
    %c0_i32 = arith.constant 0 : i32
    %c0_i32_0 = arith.constant 0 : i32
    return %arg0, %c0_i32, %arg1 : i32, i32, i32
  }
  func.func @transform_7(%arg0: i32, %arg1: i32) -> (i32, i32, i32) {
    %c0_i32 = arith.constant 0 : i32
    %c0_i32_0 = arith.constant 0 : i32
    return %arg0, %c0_i32, %arg1 : i32, i32, i32
  }
}

</mosaic_0001>

<llo_original>
// kernel: kan_block_forward.1
$region0: #{kan_block_forward.1}
  #allocation0 [shape = 'u32[]', space=smem, size = 0x4, offset = 0x4, fixed_abs, tag = 'smem constant byte address 0x4 - core index']
  #allocation1 [shape = 'u32[144,128]{1,0:T(1,128)}', space=vmem, size = 0x12000, scoped, tag = 'internal scratch']
  %s0 = inlined_call_operand.vmem [shape: f32[2,40,256], index: 0, kind: input, shape index: {}]
  %s1 = inlined_call_operand.vmem [shape: f32[8,40], index: 1, kind: input, shape index: {}]
  %s2 = inlined_call_operand.vmem [shape: f32[8,1], index: 2, kind: input, shape index: {}]
  %s3 = inlined_call_operand.vmem [shape: f32[8,32], index: 3, kind: input, shape index: {}]
  %s4 = inlined_call_operand.vmem [shape: f32[32,256], index: 4, kind: input, shape index: {}]
  %s5 = inlined_call_operand.vmem [shape: f32[8,1], index: 5, kind: input, shape index: {}]
  %s6 = inlined_call_operand.vmem [shape: f32[2,8,256], index: 6, kind: output, shape index: {0}]
  %s7 = inlined_call_operand.vmem [shape: f32[2,8,256], index: 7, kind: output, shape index: {1}]
  %8 = xla_tuple %s6, %s7
  %s9 = sld [smem:[#allocation0]]
  $region65: #{kan_block_forward.1} parent=0
    _
  %s11 = ssub.s32 1, %s9
  %s12 = scalar_select 0, %s11, %s9
  loop: start=0, step=1, limit=4
  $region2: #{kan_block_forward.1} parent=0 // loop_pre_header
    _
  $region3: #{kan_block_forward.1} parent=0 // loop_header
    %s14 = sphi 0, %s18
    %p15 = scmp.ge.s32.totalorder %s14, 4
    %s21 = sphi 0, %s33
    %s22 = sphi 0, %s29
    %s23 = sphi 0, %s21
    %s24 = sphi 0, %s22
    %s25 = sphi 0, %s23
    %s26 = sphi 0, %s24
    %s38 = sphi 0, %s40
    %s41 = sphi 0, %s38
    %s42 = sphi 0, %s41
    %s58 = sphi 0, %s42
    %s62 = sphi 0, %s62
    %s64 = sphi 0, %s62
    %s65 = sphi 0, %s64
    %s79 = sphi 0, %s65
    %s83 = sphi 0, %s83
    %s85 = sphi 0, %s83
    %s86 = sphi 0, %s85
    %s100 = sphi 0, %s86
    %s104 = sphi 0, %s104
    %s106 = sphi 0, %s104
    %s107 = sphi 0, %s106
    %s121 = sphi 0, %s107
    %s127 = sphi 0, %s129
    %s130 = sphi 0, %s127
    %s131 = sphi 0, %s130
    %s147 = sphi 0, %s131
    %s151 = sphi 0, %s151
    %s153 = sphi 0, %s151
    %s154 = sphi 0, %s153
    %s168 = sphi 0, %s154
    %s176 = sphi 0, %s178
    %s179 = sphi 0, %s176
    %s180 = sphi 0, %s179
    %s196 = sphi 0, %s180
    %s204 = sphi 0, %s206
    %s207 = sphi 0, %s204
    %s208 = sphi 0, %s207
    %s224 = sphi 0, %s208
  $region4: #{kan_block_forward.1} parent=0 // loop_header_branch
    %17 = sbr.rel (%p15) target = $region8
  $region5: #{kan_block_forward.1} parent=0 // loop_body
    %s19 = ssub.s32 %s14, 1
    %s20 = ssub.s32 %s14, 2
    %s27 = sadd.s32 1, %s22
    %p28 = scmp.ge.s32.totalorder %s27, 1
    %s29 = scalar_select %p28, 0, %s27
    %s30 = sadd.s32 1, %s21
    %s31 = scalar_select %p28, %s30, %s21
    %p32 = scmp.ge.s32.totalorder %s31, 2
    %s33 = scalar_select %p32, 0, %s31
    %s34 = ssub.s32 %s21, %s33
    %s35 = ssub.s32 %s22, %s29
    %s36 = sor.u32 %s34, %s35
    %p37 = scmp.eq.s32.totalorder %s36, 0
    %s39 = sadd.s32 %s38, 1
    %s40 = scalar_select %p37, %s38, %s39
    %p43 = pneg %p37
    %p44 = scmp.eq.s32.totalorder %s14, 1
    %p45 = por %p43, %p44
    %p46 = scmp.ne.s32.totalorder %s38, %s41
    %p47 = scmp.eq.s32.totalorder %s14, 0
    %p48 = por %p46, %p47
    %p49 = scmp.ne.s32.totalorder %s38, %s41
    %p50 = scmp.eq.s32.totalorder %s19, 1
    %p51 = por %p49, %p50
    %p52 = scmp.ne.s32.totalorder %s41, %s42
    %p53 = scmp.eq.s32.totalorder %s19, 0
    %p54 = por %p52, %p53
    %p55 = scmp.ne.s32.totalorder %s41, %s42
    %p56 = scmp.eq.s32.totalorder %s20, 1
    %p57 = por %p55, %p56
    %p59 = scmp.ne.s32.totalorder %s42, %s58
    %p60 = scmp.eq.s32.totalorder %s20, 0
    %p61 = por %p59, %p60
    %s63 = sadd.s32 %s62, 1
    %p66 = scmp.eq.s32.totalorder %s14, 1
    %p67 = scmp.ne.s32.totalorder %s62, %s64
    %p68 = scmp.eq.s32.totalorder %s14, 0
    %p69 = por %p67, %p68
    %p70 = scmp.ne.s32.totalorder %s62, %s64
    %p71 = scmp.eq.s32.totalorder %s19, 1
    %p72 = por %p70, %p71
    %p73 = scmp.ne.s32.totalorder %s64, %s65
    %p74 = scmp.eq.s32.totalorder %s19, 0
    %p75 = por %p73, %p74
    %p76 = scmp.ne.s32.totalorder %s64, %s65
    %p77 = scmp.eq.s32.totalorder %s20, 1
    %p78 = por %p76, %p77
    %p80 = scmp.ne.s32.totalorder %s65, %s79
    %p81 = scmp.eq.s32.totalorder %s20, 0
    %p82 = por %p80, %p81
    %s84 = sadd.s32 %s83, 1
    %p87 = scmp.eq.s32.totalorder %s14, 1
    %p88 = scmp.ne.s32.totalorder %s83, %s85
    %p89 = scmp.eq.s32.totalorder %s14, 0
    %p90 = por %p88, %p89
    %p91 = scmp.ne.s32.totalorder %s83, %s85
    %p92 = scmp.eq.s32.totalorder %s19, 1
    %p93 = por %p91, %p92
    %p94 = scmp.ne.s32.totalorder %s85, %s86
    %p95 = scmp.eq.s32.totalorder %s19, 0
    %p96 = por %p94, %p95
    %p97 = scmp.ne.s32.totalorder %s85, %s86
    %p98 = scmp.eq.s32.totalorder %s20, 1
    %p99 = por %p97, %p98
    %p101 = scmp.ne.s32.totalorder %s86, %s100
    %p102 = scmp.eq.s32.totalorder %s20, 0
    %p103 = por %p101, %p102
    %s105 = sadd.s32 %s104, 1
    %p108 = scmp.eq.s32.totalorder %s14, 1
    %p109 = scmp.ne.s32.totalorder %s104, %s106
    %p110 = scmp.eq.s32.totalorder %s14, 0
    %p111 = por %p109, %p110
    %p112 = scmp.ne.s32.totalorder %s104, %s106
    %p113 = scmp.eq.s32.totalorder %s19, 1
    %p114 = por %p112, %p113
    %p115 = scmp.ne.s32.totalorder %s106, %s107
    %p116 = scmp.eq.s32.totalorder %s19, 0
    %p117 = por %p115, %p116
    %p118 = scmp.ne.s32.totalorder %s106, %s107
    %p119 = scmp.eq.s32.totalorder %s20, 1
    %p120 = por %p118, %p119
    %p122 = scmp.ne.s32.totalorder %s107, %s121
    %p123 = scmp.eq.s32.totalorder %s20, 0
    %p124 = por %p122, %p123
    %s125 = ssub.s32 %s22, %s29
    %p126 = scmp.eq.s32.totalorder %s125, 0
    %s128 = sadd.s32 %s127, 1
    %s129 = scalar_select %p126, %s127, %s128
    %p132 = pneg %p126
    %p133 = scmp.eq.s32.totalorder %s14, 1
    %p134 = por %p132, %p133
    %p135 = scmp.ne.s32.totalorder %s127, %s130
    %p136 = scmp.eq.s32.totalorder %s14, 0
    %p137 = por %p135, %p136
    %p138 = scmp.ne.s32.totalorder %s127, %s130
    %p139 = scmp.eq.s32.totalorder %s19, 1
    %p140 = por %p138, %p139
    %p141 = scmp.ne.s32.totalorder %s130, %s131
    %p142 = scmp.eq.s32.totalorder %s19, 0
    %p143 = por %p141, %p142
    %p144 = scmp.ne.s32.totalorder %s130, %s131
    %p145 = scmp.eq.s32.totalorder %s20, 1
    %p146 = por %p144, %p145
    %p148 = scmp.ne.s32.totalorder %s131, %s147
    %p149 = scmp.eq.s32.totalorder %s20, 0
    %p150 = por %p148, %p149
    %s152 = sadd.s32 %s151, 1
    %p155 = scmp.eq.s32.totalorder %s14, 1
    %p156 = scmp.ne.s32.totalorder %s151, %s153
    %p157 = scmp.eq.s32.totalorder %s14, 0
    %p158 = por %p156, %p157
    %p159 = scmp.ne.s32.totalorder %s151, %s153
    %p160 = scmp.eq.s32.totalorder %s19, 1
    %p161 = por %p159, %p160
    %p162 = scmp.ne.s32.totalorder %s153, %s154
    %p163 = scmp.eq.s32.totalorder %s19, 0
    %p164 = por %p162, %p163
    %p165 = scmp.ne.s32.totalorder %s153, %s154
    %p166 = scmp.eq.s32.totalorder %s20, 1
    %p167 = por %p165, %p166
    %p169 = scmp.ne.s32.totalorder %s154, %s168
    %p170 = scmp.eq.s32.totalorder %s20, 0
    %p171 = por %p169, %p170
    %s172 = ssub.s32 %s21, %s33
    %s173 = ssub.s32 %s22, %s29
    %s174 = sor.u32 %s172, %s173
    %p175 = scmp.eq.s32.totalorder %s174, 0
    %s177 = sadd.s32 %s176, 1
    %s178 = scalar_select %p175, %s176, %s177
    %p181 = pneg %p175
    %p182 = scmp.eq.s32.totalorder %s14, 1
    %p183 = por %p181, %p182
    %p184 = scmp.ne.s32.totalorder %s176, %s179
    %p185 = scmp.eq.s32.totalorder %s14, 0
    %p186 = por %p184, %p185
    %p187 = scmp.ne.s32.totalorder %s176, %s179
    %p188 = scmp.eq.s32.totalorder %s19, 1
    %p189 = por %p187, %p188
    %p190 = scmp.ne.s32.totalorder %s179, %s180
    %p191 = scmp.eq.s32.totalorder %s19, 0
    %p192 = por %p190, %p191
    %p193 = scmp.ne.s32.totalorder %s179, %s180
    %p194 = scmp.eq.s32.totalorder %s20, 1
    %p195 = por %p193, %p194
    %p197 = scmp.ne.s32.totalorder %s180, %s196
    %p198 = scmp.eq.s32.totalorder %s20, 0
    %p199 = por %p197, %p198
    %s200 = ssub.s32 %s21, %s33
    %s201 = ssub.s32 %s22, %s29
    %s202 = sor.u32 %s200, %s201
    %p203 = scmp.eq.s32.totalorder %s202, 0
    %s205 = sadd.s32 %s204, 1
    %s206 = scalar_select %p203, %s204, %s205
    %p209 = pneg %p203
    %p210 = scmp.eq.s32.totalorder %s14, 1
    %p211 = por %p209, %p210
    %p212 = scmp.ne.s32.totalorder %s204, %s207
    %p213 = scmp.eq.s32.totalorder %s14, 0
    %p214 = por %p212, %p213
    %p215 = scmp.ne.s32.totalorder %s204, %s207
    %p216 = scmp.eq.s32.totalorder %s19, 1
    %p217 = por %p215, %p216
    %p218 = scmp.ne.s32.totalorder %s207, %s208
    %p219 = scmp.eq.s32.totalorder %s19, 0
    %p220 = por %p218, %p219
    %p221 = scmp.ne.s32.totalorder %s207, %s208
    %p222 = scmp.eq.s32.totalorder %s20, 1
    %p223 = por %p221, %p222
    %p225 = scmp.ne.s32.totalorder %s208, %s224
    %p226 = scmp.eq.s32.totalorder %s20, 0
    %p227 = por %p225, %p226
    %p228 = scmp.le.s32.totalorder 1, %s14
    %p229 = scmp.lt.s32.totalorder %s14, 3
    %p230 = pnand %p228, %p229
    %p231 = pneg %p230
    // Predicated region
    $region9: #{kan_block_forward.1} parent=5 // pred_check
      _
    $region10: #{kan_block_forward.1} parent=5 // pred_check_branch
      %233 = sbr.rel (%p230) target = $region12
    $region11: #{kan_block_forward.1} parent=5 // pred_region
      %s234 = ssub.s32 %s14, 1
      // Predicated region
      $region13: #{kan_block_forward.1} parent=11 // pred_check
        %p235 = pneg %p75
      $region14: #{kan_block_forward.1} parent=11 // pred_check_branch
        %237 = sbr.rel (%p235) target = $region16
      $region15: #{kan_block_forward.1} parent=11 // pred_region
        _
      $region16: #{kan_block_forward.1} parent=11 // pred_fallthru
        _
      // Predicated region
      $region17: #{kan_block_forward.1} parent=11 // pred_check
        %p238 = pneg %p96
      $region18: #{kan_block_forward.1} parent=11 // pred_check_branch
        %240 = sbr.rel (%p238) target = $region20
      $region19: #{kan_block_forward.1} parent=11 // pred_region
        _
      $region20: #{kan_block_forward.1} parent=11 // pred_fallthru
        _
      // Predicated region
      $region21: #{kan_block_forward.1} parent=11 // pred_check
        %p241 = pneg %p117
      $region22: #{kan_block_forward.1} parent=11 // pred_check_branch
        %243 = sbr.rel (%p241) target = $region24
      $region23: #{kan_block_forward.1} parent=11 // pred_region
        _
      $region24: #{kan_block_forward.1} parent=11 // pred_fallthru
        _
      // Predicated region
      $region25: #{kan_block_forward.1} parent=11 // pred_check
        %p244 = pneg %p143
      $region26: #{kan_block_forward.1} parent=11 // pred_check_branch
        %246 = sbr.rel (%p244) target = $region28
      $region27: #{kan_block_forward.1} parent=11 // pred_region
        %s247 = smul.u32 2, %s24
        %p248 = scmp.lt.s32.totalorder %s247, 1
        %s249 = scalar_select %p248, %s247, 1
        %s250 = smul.addr %s249, 8
        %s251 = scalar_lea.vmem %s4, %s250
        %s252 = smul.u32 2, %s24
      $region28: #{kan_block_forward.1} parent=11 // pred_fallthru
        _
      // Predicated region
      $region29: #{kan_block_forward.1} parent=11 // pred_check
        %p253 = pneg %p164
      $region30: #{kan_block_forward.1} parent=11 // pred_check_branch
        %255 = sbr.rel (%p253) target = $region32
      $region31: #{kan_block_forward.1} parent=11 // pred_region
        _
      $region32: #{kan_block_forward.1} parent=11 // pred_fallthru
        _
    $region12: #{kan_block_forward.1} parent=5 // pred_fallthru
      _
    %p256 = scmp.lt.s32.totalorder %s14, 2
    // Predicated region
    $region33: #{kan_block_forward.1} parent=5 // pred_check
      %p257 = pneg %p256
    $region34: #{kan_block_forward.1} parent=5 // pred_check_branch
      %259 = sbr.rel (%p257) target = $region36
    $region35: #{kan_block_forward.1} parent=5 // pred_region
      // Predicated region
      $region37: #{kan_block_forward.1} parent=35 // pred_check
        %p260 = pneg %p48
      $region38: #{kan_block_forward.1} parent=35 // pred_check_branch
        %262 = sbr.rel (%p260) target = $region40
      $region39: #{kan_block_forward.1} parent=35 // pred_region
        %s263 = smul.u32 2, %s22
        %p264 = scmp.lt.s32.totalorder %s21, 1
        %s265 = scalar_select %p264, %s21, 1
        %p266 = scmp.lt.s32.totalorder %s263, 1
        %s267 = scalar_select %p266, %s263, 1
        %s268 = smul.addr %s265, 10
        %s269 = sadd.s32 %s267, %s268
        %s270 = smul.addr %s269, 8
        %s271 = scalar_lea.vmem %s0, %s270
        %s272 = smul.u32 2, %s22
      $region40: #{kan_block_forward.1} parent=35 // pred_fallthru
        _
    $region36: #{kan_block_forward.1} parent=5 // pred_fallthru
      _
    %p273 = scmp.le.s32.totalorder 1, %s14
    %p274 = scmp.lt.s32.totalorder %s14, 3
    %p275 = pnand %p273, %p274
    %p276 = pneg %p275
    // Predicated region
    $region41: #{kan_block_forward.1} parent=5 // pred_check
      _
    $region42: #{kan_block_forward.1} parent=5 // pred_check_branch
      %278 = sbr.rel (%p275) target = $region44
    $region43: #{kan_block_forward.1} parent=5 // pred_region
      %s279 = ssub.s32 %s14, 1
      %s280 = smul.u32 2, %s24
      %p281 = scmp.lt.s32.totalorder %s23, 1
      %s282 = scalar_select %p281, %s23, 1
      %p283 = scmp.lt.s32.totalorder %s280, 1
      %s284 = scalar_select %p283, %s280, 1
      %s285 = smul.addr %s282, 10
      %s286 = sadd.s32 %s284, %s285
      %s287 = smul.addr %s286, 8
      %s288 = scalar_lea.vmem %s0, %s287
      %p289 = pneg %p54
      %p290 = pneg %p51
      %p291 = pneg %p75
      %p292 = pneg %p72
      %p293 = pneg %p96
      %p294 = pneg %p93
      %p295 = pneg %p117
      %p296 = pneg %p114
      %s297 = smul.u32 2, %s24
      %p298 = scmp.lt.s32.totalorder %s297, 1
      %s299 = scalar_select %p298, %s297, 1
      %s300 = smul.addr %s299, 8
      %s301 = scalar_lea.vmem %s4, %s300
      %p302 = pneg %p143
      %p303 = pneg %p140
      %p304 = pneg %p164
      %p305 = pneg %p161
      %p306 = pneg %p192
      %p307 = pneg %p189
      %s308 = smul.u32 2, %s24
      %p309 = scmp.lt.s32.totalorder %s23, 1
      %s310 = scalar_select %p309, %s23, 1
      %p311 = scmp.lt.s32.totalorder %s308, 1
      %s312 = scalar_select %p311, %s308, 1
      %s313 = smul.addr %s310, 2
      %s314 = sadd.s32 %s312, %s313
      %s315 = smul.addr %s314, 8
      %s316 = scalar_lea.vmem %s6, %s315
      %p317 = pneg %p220
      %p318 = pneg %p217
      %s319 = smul.u32 2, %s24
      %p320 = scmp.lt.s32.totalorder %s23, 1
      %s321 = scalar_select %p320, %s23, 1
      %p322 = scmp.lt.s32.totalorder %s319, 1
      %s323 = scalar_select %p322, %s319, 1
      %s324 = smul.addr %s321, 2
      %s325 = sadd.s32 %s323, %s324
      %s326 = smul.addr %s325, 8
      %s327 = scalar_lea.vmem %s7, %s326
      %s328 = smul.u32 2, %s24
      %p329 = scmp.lt.s32.totalorder %s23, 1
      %s330 = scalar_select %p329, %s23, 1
      %p331 = scmp.lt.s32.totalorder %s328, 1
      %s332 = scalar_select %p331, %s328, 1
      %s333 = smul.addr %s330, 10
      %s334 = sadd.s32 %s332, %s333
      %s335 = smul.addr %s334, 8
      %s336 = scalar_lea.vmem %s0, %s335
      %s337 = smul.u32 2, %s24
      %s338 = smul.u32 2, %s24
      %p339 = scmp.lt.s32.totalorder %s338, 1
      %s340 = scalar_select %p339, %s338, 1
      %s341 = smul.addr %s340, 8
      %s342 = scalar_lea.vmem %s4, %s341
      %s343 = smul.u32 2, %s24
      %s344 = smul.u32 2, %s24
      %p345 = scmp.lt.s32.totalorder %s23, 1
      %s346 = scalar_select %p345, %s23, 1
      %p347 = scmp.lt.s32.totalorder %s344, 1
      %s348 = scalar_select %p347, %s344, 1
      %s349 = smul.addr %s346, 2
      %s350 = sadd.s32 %s348, %s349
      %s351 = smul.addr %s350, 8
      %s352 = scalar_lea.vmem %s6, %s351
      %s353 = smul.u32 2, %s24
      %s354 = smul.u32 2, %s24
      %p355 = scmp.lt.s32.totalorder %s23, 1
      %s356 = scalar_select %p355, %s23, 1
      %p357 = scmp.lt.s32.totalorder %s354, 1
      %s358 = scalar_select %p357, %s354, 1
      %s359 = smul.addr %s356, 2
      %s360 = sadd.s32 %s358, %s359
      %s361 = smul.addr %s360, 8
      %s362 = scalar_lea.vmem %s7, %s361
      %s363 = smul.u32 2, %s24
      %v364 = vld [vmem:[%s1] sm:$0xff]
      %v365 = vld [vmem:[%s336] sm:$0xff]
      %v366 = vld [vmem:[%s336 + $0x8] sm:$0xff]
      %v367 = vld [vmem:[%s336 + $0x10] sm:$0xff]
      %v368 = vld [vmem:[%s336 + $0x18] sm:$0xff]
      %v369 = vld [vmem:[%s336 + $0x20] sm:$0xff]
      %v370 = vld [vmem:[%s336 + $0x28] sm:$0xff]
      %v371 = vld [vmem:[%s336 + $0x30] sm:$0xff]
      %v372 = vld [vmem:[%s336 + $0x38] sm:$0xff]
      %v373 = vld [vmem:[%s336 + $0x40] sm:$0xff]
      %v374 = vld [vmem:[%s336 + $0x48] sm:$0xff]
      %v375 = vld [vmem:[%s2] sm:$0xff]
      %377 = vset.pattern.permute.xlu0 0
      %378 = vperm.xlu0 %377, %v375
      %v379 = vpop.permute.xlu0 %378
      %vm381 = vcmask 326656
      %v383 = vsel %vm381, %v364, 0
      %385 = vmatprep.subr.mxu0 0.0
      %386 = vmatpush1.msra.mxu0 0.0
      %387 = vmatprep.subr.mxu0 0.0
      %388 = vmatpush1.msra.mxu0 0.0
      %389 = vmatprep.subr.mxu0 0.0
      %390 = vmatpush1.msra.mxu0 0.0
      %391 = vmatprep.subr.mxu0 0.0
      %392 = vmatpush1.msra.mxu0 0.0
      %393 = vmatprep.subr.mxu0 0.0
      %394 = vmatpush1.msra.mxu0 0.0
      %395 = vmatprep.subr.mxu0 0.0
      %396 = vmatpush1.msra.mxu0 0.0
      %397 = vmatprep.subr.mxu0 0.0
      %398 = vmatpush1.msra.mxu0 0.0
      %399 = vmatprep.subr.mxu0 0.0
      %400 = vmatpush1.msra.mxu0 0.0
      %401 = vmatprep.subr.mxu0 0.0
      %402 = vmatpush1.msra.mxu0 0.0
      %403 = vmatprep.subr.mxu0 0.0
      %404 = vmatpush1.msra.mxu0 0.0
      %405 = vmatprep.subr.mxu0 0.0
      %406 = vmatpush1.msra.mxu0 0.0
      %407 = vmatprep.subr.mxu0 %v374
      %408 = vmatpush1.msra.mxu0 %v373
      %409 = vmatprep.subr.mxu0 %v372
      %410 = vmatpush1.msra.mxu0 %v371
      %411 = vmatprep.subr.mxu0 %v370
      %412 = vmatpush1.msra.mxu0 %v369
      %413 = vmatprep.subr.mxu0 %v368
      %414 = vmatpush1.msra.mxu0 %v367
      %415 = vmatprep.subr.mxu0 %v366
      %416 = vmatpush1.msra.mxu0 %v365
      %417 = vmatprep.subr.mxu0 0.0
      %418 = vmatpush2.msra.mxu0 0.0
      %419 = vmatprep.subr.mxu0 0.0
      %420 = vmatpush2.msra.mxu0 0.0
      %421 = vmatprep.subr.mxu0 0.0
      %422 = vmatpush2.msra.mxu0 0.0
      %423 = vmatprep.subr.mxu0 0.0
      %424 = vmatpush2.msra.mxu0 0.0
      %425 = vmatprep.subr.mxu0 0.0
      %426 = vmatpush2.msra.mxu0 0.0
      %427 = vmatprep.subr.mxu0 0.0
      %428 = vmatpush2.msra.mxu0 0.0
      %429 = vmatprep.subr.mxu0 0.0
      %430 = vmatpush2.msra.mxu0 0.0
      %431 = vmatprep.subr.mxu0 0.0
      %432 = vmatpush2.msra.mxu0 0.0
      %433 = vmatprep.subr.mxu0 0.0
      %434 = vmatpush2.msra.mxu0 0.0
      %435 = vmatprep.subr.mxu0 0.0
      %436 = vmatpush2.msra.mxu0 0.0
      %437 = vmatprep.subr.mxu0 0.0
      %438 = vmatpush2.msra.mxu0 0.0
      %439 = vmatprep.subr.mxu0 0.0
      %440 = vmatpush2.msra.mxu0 0.0
      %441 = vmatprep.subr.mxu0 0.0
      %442 = vmatpush2.msra.mxu0 0.0
      %443 = vmatprep.subr.mxu0 0.0
      %444 = vmatpush2.msra.mxu0 0.0
      %445 = vmatprep.subr.mxu0 0.0
      %446 = vmatpush2.msra.mxu0 0.0
      %447 = vmatprep.subr.mxu0 0.0
      %448 = vmatpush2.msra.mxu0 0.0
      %449 = vmatprep.mubr.f32.mxu0 0.0
      %450 = vmatmul.mubr.f32.gmra.mxu0 %v383
      %v451 = vpop.f32.mrf.mxu0
      %v452 = vadd.f32 %v379, %v451
      %v453 = vpop.f32.mrf.mxu0
      %v454 = vadd.f32 %v379, %v453
      %455 = vdwg.mxu0
      %456 = vst [vmem:[%s352] sm:$0xff] %v452
      %457 = vst [vmem:[%s352 + $0x8] sm:$0xff] %v454
      %v458 = vld [vmem:[%s3] sm:$0xff]
      %v459 = vld [vmem:[%s342] sm:$0xff]
      %v460 = vld [vmem:[%s342 + $0x8] sm:$0xff]
      %v461 = vld [vmem:[%s342 + $0x10] sm:$0xff]
      %v462 = vld [vmem:[%s342 + $0x18] sm:$0xff]
      %v463 = vld [vmem:[%s342 + $0x20] sm:$0xff]
      %v464 = vld [vmem:[%s342 + $0x28] sm:$0xff]
      %v465 = vld [vmem:[%s342 + $0x30] sm:$0xff]
      %v466 = vld [vmem:[%s342 + $0x38] sm:$0xff]
      %v467 = vld [vmem:[%s5] sm:$0xff]
      %469 = vset.pattern.permute.xlu0 0
      %470 = vperm.xlu0 %469, %v467
      %v471 = vpop.permute.xlu0 %470
      %vm473 = vcmask 261120
      %v475 = vsel %vm473, %v458, 0
      %477 = vmatprep.subr.mxu0 0.0
      %478 = vmatpush1.msra.mxu0 0.0
      %479 = vmatprep.subr.mxu0 0.0
      %480 = vmatpush1.msra.mxu0 0.0
      %481 = vmatprep.subr.mxu0 0.0
      %482 = vmatpush1.msra.mxu0 0.0
      %483 = vmatprep.subr.mxu0 0.0
      %484 = vmatpush1.msra.mxu0 0.0
      %485 = vmatprep.subr.mxu0 0.0
      %486 = vmatpush1.msra.mxu0 0.0
      %487 = vmatprep.subr.mxu0 0.0
      %488 = vmatpush1.msra.mxu0 0.0
      %489 = vmatprep.subr.mxu0 0.0
      %490 = vmatpush1.msra.mxu0 0.0
      %491 = vmatprep.subr.mxu0 0.0
      %492 = vmatpush1.msra.mxu0 0.0
      %493 = vmatprep.subr.mxu0 0.0
      %494 = vmatpush1.msra.mxu0 0.0
      %495 = vmatprep.subr.mxu0 0.0
      %496 = vmatpush1.msra.mxu0 0.0
      %497 = vmatprep.subr.mxu0 0.0
      %498 = vmatpush1.msra.mxu0 0.0
      %499 = vmatprep.subr.mxu0 0.0
      %500 = vmatpush1.msra.mxu0 0.0
      %501 = vmatprep.subr.mxu0 %v466
      %502 = vmatpush1.msra.mxu0 %v465
      %503 = vmatprep.subr.mxu0 %v464
      %504 = vmatpush1.msra.mxu0 %v463
      %505 = vmatprep.subr.mxu0 %v462
      %506 = vmatpush1.msra.mxu0 %v461
      %507 = vmatprep.subr.mxu0 %v460
      %508 = vmatpush1.msra.mxu0 %v459
      %509 = vmatprep.subr.mxu0 0.0
      %510 = vmatpush2.msra.mxu0 0.0
      %511 = vmatprep.subr.mxu0 0.0
      %512 = vmatpush2.msra.mxu0 0.0
      %513 = vmatprep.subr.mxu0 0.0
      %514 = vmatpush2.msra.mxu0 0.0
      %515 = vmatprep.subr.mxu0 0.0
      %516 = vmatpush2.msra.mxu0 0.0
      %517 = vmatprep.subr.mxu0 0.0
      %518 = vmatpush2.msra.mxu0 0.0
      %519 = vmatprep.subr.mxu0 0.0
      %520 = vmatpush2.msra.mxu0 0.0
      %521 = vmatprep.subr.mxu0 0.0
      %522 = vmatpush2.msra.mxu0 0.0
      %523 = vmatprep.subr.mxu0 0.0
      %524 = vmatpush2.msra.mxu0 0.0
      %525 = vmatprep.subr.mxu0 0.0
      %526 = vmatpush2.msra.mxu0 0.0
      %527 = vmatprep.subr.mxu0 0.0
      %528 = vmatpush2.msra.mxu0 0.0
      %529 = vmatprep.subr.mxu0 0.0
      %530 = vmatpush2.msra.mxu0 0.0
      %531 = vmatprep.subr.mxu0 0.0
      %532 = vmatpush2.msra.mxu0 0.0
      %533 = vmatprep.subr.mxu0 0.0
      %534 = vmatpush2.msra.mxu0 0.0
      %535 = vmatprep.subr.mxu0 0.0
      %536 = vmatpush2.msra.mxu0 0.0
      %537 = vmatprep.subr.mxu0 0.0
      %538 = vmatpush2.msra.mxu0 0.0
      %539 = vmatprep.subr.mxu0 0.0
      %540 = vmatpush2.msra.mxu0 0.0
      %541 = vmatprep.mubr.f32.mxu0 0.0
      %542 = vmatmul.mubr.f32.gmra.mxu0 %v475
      %v543 = vpop.f32.mrf.mxu0
      %v544 = vadd.f32 %v471, %v543
      %v545 = vpop.f32.mrf.mxu0
      %v546 = vadd.f32 %v471, %v545
      %547 = vdwg.mxu0
      %548 = vst [vmem:[%s362] sm:$0xff] %v544
      %549 = vst [vmem:[%s362 + $0x8] sm:$0xff] %v546
      %s550 = smul.u32 2, %s24
      %p551 = scmp.lt.s32.totalorder %s23, 1
      %s552 = scalar_select %p551, %s23, 1
      %p553 = scmp.lt.s32.totalorder %s550, 1
      %s554 = scalar_select %p553, %s550, 1
      %s555 = smul.addr %s552, 2
      %s556 = sadd.s32 %s554, %s555
      %s557 = smul.addr %s556, 8
      %s558 = scalar_lea.vmem %s6, %s557
      %s559 = smul.u32 2, %s24
      %p560 = scmp.lt.s32.totalorder %s23, 1
      %s561 = scalar_select %p560, %s23, 1
      %p562 = scmp.lt.s32.totalorder %s559, 1
      %s563 = scalar_select %p562, %s559, 1
      %s564 = smul.addr %s561, 2
      %s565 = sadd.s32 %s563, %s564
      %s566 = smul.addr %s565, 8
      %s567 = scalar_lea.vmem %s7, %s566
      // Predicated region
      $region45: #{kan_block_forward.1} parent=43 // pred_check
        %p568 = pneg %p189
      $region46: #{kan_block_forward.1} parent=43 // pred_check_branch
        %570 = sbr.rel (%p568) target = $region48
      $region47: #{kan_block_forward.1} parent=43 // pred_region
        %s571 = smul.u32 2, %s24
      $region48: #{kan_block_forward.1} parent=43 // pred_fallthru
        _
      // Predicated region
      $region49: #{kan_block_forward.1} parent=43 // pred_check
        %p572 = pneg %p217
      $region50: #{kan_block_forward.1} parent=43 // pred_check_branch
        %574 = sbr.rel (%p572) target = $region52
      $region51: #{kan_block_forward.1} parent=43 // pred_region
        %s575 = smul.u32 2, %s24
      $region52: #{kan_block_forward.1} parent=43 // pred_fallthru
        _
    $region44: #{kan_block_forward.1} parent=5 // pred_fallthru
      _
    %p576 = scmp.le.s32.totalorder 2, %s14
    // Predicated region
    $region53: #{kan_block_forward.1} parent=5 // pred_check
      %p577 = pneg %p576
    $region54: #{kan_block_forward.1} parent=5 // pred_check_branch
      %579 = sbr.rel (%p577) target = $region56
    $region55: #{kan_block_forward.1} parent=5 // pred_region
      %s580 = ssub.s32 %s14, 2
      // Predicated region
      $region57: #{kan_block_forward.1} parent=55 // pred_check
        %p581 = pneg %p195
      $region58: #{kan_block_forward.1} parent=55 // pred_check_branch
        %583 = sbr.rel (%p581) target = $region60
      $region59: #{kan_block_forward.1} parent=55 // pred_region
        %s584 = smul.u32 2, %s26
        %p585 = scmp.lt.s32.totalorder %s25, 1
        %s586 = scalar_select %p585, %s25, 1
        %p587 = scmp.lt.s32.totalorder %s584, 1
        %s588 = scalar_select %p587, %s584, 1
        %s589 = smul.addr %s586, 2
        %s590 = sadd.s32 %s588, %s589
        %s591 = smul.addr %s590, 8
        %s592 = scalar_lea.vmem %s6, %s591
      $region60: #{kan_block_forward.1} parent=55 // pred_fallthru
        _
      // Predicated region
      $region61: #{kan_block_forward.1} parent=55 // pred_check
        %p593 = pneg %p223
      $region62: #{kan_block_forward.1} parent=55 // pred_check_branch
        %595 = sbr.rel (%p593) target = $region64
      $region63: #{kan_block_forward.1} parent=55 // pred_region
        %s596 = smul.u32 2, %s26
        %p597 = scmp.lt.s32.totalorder %s25, 1
        %s598 = scalar_select %p597, %s25, 1
        %p599 = scmp.lt.s32.totalorder %s596, 1
        %s600 = scalar_select %p599, %s596, 1
        %s601 = smul.addr %s598, 2
        %s602 = sadd.s32 %s600, %s601
        %s603 = smul.addr %s602, 8
        %s604 = scalar_lea.vmem %s7, %s603
      $region64: #{kan_block_forward.1} parent=55 // pred_fallthru
        _
    $region56: #{kan_block_forward.1} parent=5 // pred_fallthru
      _
  $region6: #{kan_block_forward.1} parent=0 // loop_footer
    %s18 = sadd.s32 1, %s14
  $region7: #{kan_block_forward.1} parent=0 // loop_footer_branch
    %13 = sbr.rel target = $region3
  $region8: #{kan_block_forward.1} parent=0 // loop_exit
    _

</llo_original>
